<compile_context>
chip_gen: v6e
topology: v6e:2x2x1
jax: 0.10.0
libtpu: 0.0.40
codegen_flags: <defaults>
</compile_context>

<pallas_src>
import functools

import jax
import jax.numpy as jnp
from jax.experimental import pallas as pl
from jax.experimental.pallas import tpu as pltpu


_LANE = 128      # vreg lane width  (last dim)
_SUBLANE = 8     # vreg sublane width (second-to-last dim)


def _round_up(x, m):
    return (x + m - 1) // m * m


# ----------------------------- fused kernel --------------------------------

def _make_fused_kernel(n_layer, d_last_true, d_last_pad, compute_dtype):
    """Build the fused multi-layer RNN-cell kernel.

    Ref layout (inputs then outputs):
      inp, hiddens[0..n-1], (wx, wh, b) * n_layer   |   prob, new_hiddens[0..n-1]
    """

    def kernel(*refs):
        n_in = 1 + 4 * n_layer
        inp_ref = refs[0]
        h_refs = refs[1:1 + n_layer]
        w_refs = refs[1 + n_layer:n_in]
        prob_ref = refs[n_in]
        nh_refs = refs[n_in + 1:]

        x = inp_ref[...]                                  # (bt, d0_pad), compute_dtype
        for i in range(n_layer):
            wx_ref, wh_ref, b_ref = w_refs[3 * i:3 * i + 3]
            # split matmul == Linear(cat(x, h)); accumulate in f32 on the MXU
            y = jnp.dot(x, wx_ref[...], preferred_element_type=jnp.float32)
            y = y + jnp.dot(h_refs[i][...], wh_ref[...],
                            preferred_element_type=jnp.float32)
            y = y + b_ref[...]                            # (1, d_pad) broadcast, f32

            if i < n_layer - 1:
                relu = jnp.maximum(y, 0.0)
                nh_refs[i][...] = relu.astype(nh_refs[i].dtype)
                # dropout(p=0.05) is identity in eval mode
                x = relu.astype(compute_dtype)            # feed next layer's dot
            else:
                nh_refs[i][...] = y.astype(nh_refs[i].dtype)   # pre-softmax logits
                if d_last_pad > d_last_true:
                    lane = jax.lax.broadcasted_iota(jnp.int32, y.shape, 1)
                    y = jnp.where(lane < d_last_true, y, -1e30)   # mask padding
                m = jnp.max(y, axis=1, keepdims=True)
                e = jnp.exp(y - m)
                denom = jnp.sum(e, axis=1, keepdims=True)
                prob = e * pl.reciprocal(denom, approx=True) + 1e-7
                prob_ref[...] = prob.astype(prob_ref.dtype)

    return kernel


# ----------------------------- jitted forward ------------------------------

def _forward_impl(inp, hiddens, flat_params, *, sizes, compute_dtype):
    """Pad to lane/sublane-dense shapes, run the fused kernel, un-pad."""
    n_layer = len(sizes) - 1
    batch = inp.shape[0]

    batch_tile = min(_round_up(batch, _SUBLANE), 256)
    batch_pad = _round_up(batch, batch_tile)
    d_pads = [_round_up(s, _LANE) for s in sizes]

    def pad2(x, rows, cols):
        return jnp.pad(x, ((0, rows - x.shape[0]), (0, cols - x.shape[1])))

    inp_p = pad2(inp, batch_pad, d_pads[0]).astype(compute_dtype)
    hiddens_p = [pad2(h, batch_pad, d_pads[i + 1]).astype(compute_dtype)
                 for i, h in enumerate(hiddens)]

    # weights already padded at init; cast activations/weights to compute dtype
    params_cast = []
    for i in range(n_layer):
        wx, wh, b = flat_params[3 * i:3 * i + 3]
        params_cast.extend([wx.astype(compute_dtype), wh.astype(compute_dtype), b])

    grid = (batch_pad // batch_tile,)

    in_specs = [pl.BlockSpec((batch_tile, d_pads[0]), lambda g: (g, 0))]
    for i in range(n_layer):
        d = d_pads[i + 1]
        in_specs.append(pl.BlockSpec((batch_tile, d), lambda g: (g, 0)))
    for p in params_cast:
        in_specs.append(pl.BlockSpec(tuple(p.shape), lambda g: (0, 0)))

    out_shapes = [jax.ShapeDtypeStruct((batch_pad, d_pads[-1]), jnp.float32)]
    out_specs = [pl.BlockSpec((batch_tile, d_pads[-1]), lambda g: (g, 0))]
    for i in range(n_layer):
        d = d_pads[i + 1]
        out_shapes.append(jax.ShapeDtypeStruct((batch_pad, d), jnp.float32))
        out_specs.append(pl.BlockSpec((batch_tile, d), lambda g: (g, 0)))

    kernel = _make_fused_kernel(n_layer, sizes[-1], d_pads[-1], compute_dtype)

    outs = pl.pallas_call(
        kernel,
        out_shape=tuple(out_shapes),
        grid=grid,
        in_specs=in_specs,
        out_specs=tuple(out_specs),
        compiler_params=pltpu.CompilerParams(
            dimension_semantics=("parallel",)),   # batch tiles -> v7x megacore
    )(inp_p, *hiddens_p, *params_cast)

    prob_p, nh_p = outs[0], outs[1:]
    output = prob_p[:batch, :sizes[-1]]
    new_hiddens = [nh_p[i][:batch, :sizes[i + 1]] for i in range(n_layer)]
    return output, new_hiddens


_jit_forward = functools.partial(
    jax.jit, static_argnames=("sizes", "compute_dtype"))(_forward_impl)


# ------------------------------- Rnn module --------------------------------

class RnnPallas:
    """JAX/Pallas port of the PyTorch Rnn module (eval-mode forward)."""

    def __init__(self, sizes, key, compute_dtype=jnp.float32):
        self.sizes = tuple(sizes)
        self.n_layer = len(sizes) - 1
        self.compute_dtype = compute_dtype
        d_pads = [_round_up(s, _LANE) for s in self.sizes]

        self.torch_params = []   # (W, b) in original PyTorch (out, in) layout
        flat = []
        for i in range(self.n_layer):
            fan_in = sizes[i] + sizes[i + 1]
            fan_out = sizes[i + 1]
            key, kw, kb = jax.random.split(key, 3)
            bound = 1.0 / (fan_in ** 0.5)   # nn.Linear default U(-1/sqrt(fan_in), ..)
            w = jax.random.uniform(kw, (fan_out, fan_in), jnp.float32, -bound, bound)
            b = jax.random.uniform(kb, (fan_out,), jnp.float32, -bound, bound)
            self.torch_params.append((w, b))

            # pre-split + transpose, then zero-pad to lane-dense (128) tiles
            wx = jnp.transpose(w[:, :sizes[i]])      # (sizes[i],   fan_out)
            wh = jnp.transpose(w[:, sizes[i]:])      # (sizes[i+1], fan_out)
            wx_p = jnp.zeros((d_pads[i], d_pads[i + 1]), jnp.float32)
            wx_p = wx_p.at[:sizes[i], :fan_out].set(wx)
            wh_p = jnp.zeros((d_pads[i + 1], d_pads[i + 1]), jnp.float32)
            wh_p = wh_p.at[:fan_out, :fan_out].set(wh)
            b_p = jnp.zeros((1, d_pads[i + 1]), jnp.float32)
            b_p = b_p.at[0, :fan_out].set(b)
            flat.extend([wx_p, wh_p, b_p])
        self.flat_params = tuple(flat)

    def init_hidden(self, batch=1):
        return [jnp.zeros((batch, self.sizes[i + 1]), jnp.float32)
                for i in range(self.n_layer)]

    def forward(self, inp, hiddens, is_training=False):
        # TODO(synk): training-mode dropout (p=0.05) not implemented; eval only.
        return _jit_forward(inp, tuple(hiddens), self.flat_params,
                            sizes=self.sizes, compute_dtype=self.compute_dtype)


# ------------------------------ reference ----------------------------------

def _reference_forward(torch_params, sizes, inp, hiddens):
    """Pure-JAX reference using the original PyTorch (out, in) layout + concat."""
    n_layer = len(sizes) - 1
    combined = jnp.concatenate([inp, hiddens[0]], axis=1)
    new_hiddens = []
    out = None
    for i in range(n_layer):
        w, b = torch_params[i]
        out = combined @ w.T + b
        if i < n_layer - 1:
            out = jax.nn.relu(out)
            combined = jnp.concatenate([out, hiddens[i + 1]], axis=1)
        new_hiddens.append(out)
    output = jax.nn.softmax(out, axis=1) + 1e-7
    return output, new_hiddens


# --------------------------------- main -------------------------------------

if __name__ == "__main__":
    key = jax.random.PRNGKey(0)
    sizes = (32, 64, 32)          # n_layer = 2
    batch = 2

    key, k_model, k_inp, k_h0, k_h1 = jax.random.split(key, 5)
    inp = jax.random.normal(k_inp, (batch, sizes[0]), jnp.float32)
    hiddens = [
        jax.random.normal(k_h0, (batch, sizes[1]), jnp.float32),
        jax.random.normal(k_h1, (batch, sizes[2]), jnp.float32),
    ]

    ref_out, ref_hiddens = _reference_forward(
        RnnPallas(sizes, k_model).torch_params, sizes, inp, hiddens)

    # ---- float32 compute path ----
    model = RnnPallas(sizes, k_model, compute_dtype=jnp.float32)
    output, new_hiddens = model.forward(inp, hiddens)
    output = jax.block_until_ready(output)
    new_hiddens = [jax.block_until_ready(h) for h in new_hiddens]

    # prob uses the EUP approx reciprocal -> compare at ~1e-3
    assert output.shape == ref_out.shape
    assert jnp.allclose(output, ref_out, atol=2e-3, rtol=2e-3)
    for a, b in zip(new_hiddens, ref_hiddens):
        assert a.shape == b.shape
        assert jnp.allclose(a, b, atol=1e-5, rtol=1e-5)

    # ---- bf16 compute path (MXU-native on v6e/v7x; f32 accumulation) ----
    model_bf16 = RnnPallas(sizes, k_model, compute_dtype=jnp.bfloat16)
    out_bf, nh_bf = model_bf16.forward(inp, hiddens)
    out_bf = jax.block_until_ready(out_bf)
    assert jnp.allclose(out_bf, ref_out, atol=1e-1, rtol=1e-1)
    for a, b in zip(nh_bf, ref_hiddens):
        assert jnp.allclose(a, b, atol=1e-1, rtol=1e-1)

    print("KERNEL_OK")
</pallas_src>

<mosaic_0001>
module attributes {stable_mosaic.version = 11 : i64} {
  func.func @kernel(%arg0: i32, %arg1: memref<8x128xf32, #tpu.memory_space<vmem>>, %arg2: memref<8x128xf32, #tpu.memory_space<vmem>>, %arg3: memref<8x128xf32, #tpu.memory_space<vmem>>, %arg4: memref<128x128xf32, #tpu.memory_space<vmem>>, %arg5: memref<128x128xf32, #tpu.memory_space<vmem>>, %arg6: memref<1x128xf32, #tpu.memory_space<vmem>>, %arg7: memref<128x128xf32, #tpu.memory_space<vmem>>, %arg8: memref<128x128xf32, #tpu.memory_space<vmem>>, %arg9: memref<1x128xf32, #tpu.memory_space<vmem>>, %arg10: memref<8x128xf32, #tpu.memory_space<vmem>>, %arg11: memref<8x128xf32, #tpu.memory_space<vmem>>, %arg12: memref<8x128xf32, #tpu.memory_space<vmem>>) attributes {dimension_semantics = [#tpu.dimension_semantics<parallel>], iteration_bounds = array<i64: 1>, scalar_prefetch = 0 : i64, scratch_operands = 0 : i64, tpu.core_type = #tpu.core_type<tc>, window_params = [{transform_indices = @transform_0, window_bounds = array<i64: 8, 128>}, {transform_indices = @transform_1, window_bounds = array<i64: 8, 128>}, {transform_indices = @transform_2, window_bounds = array<i64: 8, 128>}, {pipeline_mode = #tpu.pipeline_mode<synchronous>, transform_indices = @transform_3, window_bounds = array<i64: 128, 128>}, {pipeline_mode = #tpu.pipeline_mode<synchronous>, transform_indices = @transform_4, window_bounds = array<i64: 128, 128>}, {pipeline_mode = #tpu.pipeline_mode<synchronous>, transform_indices = @transform_5, window_bounds = array<i64: 1, 128>}, {pipeline_mode = #tpu.pipeline_mode<synchronous>, transform_indices = @transform_6, window_bounds = array<i64: 128, 128>}, {pipeline_mode = #tpu.pipeline_mode<synchronous>, transform_indices = @transform_7, window_bounds = array<i64: 128, 128>}, {pipeline_mode = #tpu.pipeline_mode<synchronous>, transform_indices = @transform_8, window_bounds = array<i64: 1, 128>}, {transform_indices = @transform_9, window_bounds = array<i64: 8, 128>}, {transform_indices = @transform_10, window_bounds = array<i64: 8, 128>}, {transform_indices = @transform_11, window_bounds = array<i64: 8, 128>}]} {
    %c0 = arith.constant 0 : index
    %c0_0 = arith.constant 0 : index
    %0 = vector.load %arg1[%c0, %c0_0] : memref<8x128xf32, #tpu.memory_space<vmem>>, vector<8x128xf32>
    %c0_1 = arith.constant 0 : index
    %c0_2 = arith.constant 0 : index
    %1 = vector.load %arg4[%c0_1, %c0_2] : memref<128x128xf32, #tpu.memory_space<vmem>>, vector<128x128xf32>
    %cst = arith.constant dense<0.000000e+00> : vector<8x128xf32>
    %2 = tpu.matmul %0, %1, %cst {dimension_numbers = #tpu.dot_dimension_numbers<[1], [0], [0], [1], [0, 0, 1, 1], [], []>} : vector<8x128xf32>, vector<128x128xf32>, vector<8x128xf32> -> vector<8x128xf32>
    %c0_3 = arith.constant 0 : index
    %c0_4 = arith.constant 0 : index
    %3 = vector.load %arg2[%c0_3, %c0_4] : memref<8x128xf32, #tpu.memory_space<vmem>>, vector<8x128xf32>
    %c0_5 = arith.constant 0 : index
    %c0_6 = arith.constant 0 : index
    %4 = vector.load %arg5[%c0_5, %c0_6] : memref<128x128xf32, #tpu.memory_space<vmem>>, vector<128x128xf32>
    %cst_7 = arith.constant dense<0.000000e+00> : vector<8x128xf32>
    %5 = tpu.matmul %3, %4, %cst_7 {dimension_numbers = #tpu.dot_dimension_numbers<[1], [0], [0], [1], [0, 0, 1, 1], [], []>} : vector<8x128xf32>, vector<128x128xf32>, vector<8x128xf32> -> vector<8x128xf32>
    %6 = arith.addf %2, %5 : vector<8x128xf32>
    %c0_8 = arith.constant 0 : index
    %c0_9 = arith.constant 0 : index
    %7 = vector.load %arg6[%c0_8, %c0_9] : memref<1x128xf32, #tpu.memory_space<vmem>>, vector<1x128xf32>
    %8 = vector.broadcast %7 : vector<1x128xf32> to vector<8x128xf32>
    %9 = arith.addf %6, %8 : vector<8x128xf32>
    %cst_10 = arith.constant 0.000000e+00 : f32
    %10 = vector.broadcast %cst_10 : f32 to vector<8x128xf32>
    %11 = arith.maximumf %9, %10 : vector<8x128xf32>
    %c0_11 = arith.constant 0 : index
    %c0_12 = arith.constant 0 : index
    %12 = vector.load %arg11[%c0_11, %c0_12] : memref<8x128xf32, #tpu.memory_space<vmem>>, vector<8x128xf32>
    tpu.vector_store %arg11[%c0_11, %c0_12], %11 {strides = array<i32>} : memref<8x128xf32, #tpu.memory_space<vmem>>, vector<8x128xf32>,
    %c0_13 = arith.constant 0 : index
    %c0_14 = arith.constant 0 : index
    %13 = vector.load %arg7[%c0_13, %c0_14] : memref<128x128xf32, #tpu.memory_space<vmem>>, vector<128x128xf32>
    %cst_15 = arith.constant dense<0.000000e+00> : vector<8x128xf32>
    %14 = tpu.matmul %11, %13, %cst_15 {dimension_numbers = #tpu.dot_dimension_numbers<[1], [0], [0], [1], [0, 0, 1, 1], [], []>} : vector<8x128xf32>, vector<128x128xf32>, vector<8x128xf32> -> vector<8x128xf32>
    %c0_16 = arith.constant 0 : index
    %c0_17 = arith.constant 0 : index
    %15 = vector.load %arg3[%c0_16, %c0_17] : memref<8x128xf32, #tpu.memory_space<vmem>>, vector<8x128xf32>
    %c0_18 = arith.constant 0 : index
    %c0_19 = arith.constant 0 : index
    %16 = vector.load %arg8[%c0_18, %c0_19] : memref<128x128xf32, #tpu.memory_space<vmem>>, vector<128x128xf32>
    %cst_20 = arith.constant dense<0.000000e+00> : vector<8x128xf32>
    %17 = tpu.matmul %15, %16, %cst_20 {dimension_numbers = #tpu.dot_dimension_numbers<[1], [0], [0], [1], [0, 0, 1, 1], [], []>} : vector<8x128xf32>, vector<128x128xf32>, vector<8x128xf32> -> vector<8x128xf32>
    %18 = arith.addf %14, %17 : vector<8x128xf32>
    %c0_21 = arith.constant 0 : index
    %c0_22 = arith.constant 0 : index
    %19 = vector.load %arg9[%c0_21, %c0_22] : memref<1x128xf32, #tpu.memory_space<vmem>>, vector<1x128xf32>
    %20 = vector.broadcast %19 : vector<1x128xf32> to vector<8x128xf32>
    %21 = arith.addf %18, %20 : vector<8x128xf32>
    %c0_23 = arith.constant 0 : index
    %c0_24 = arith.constant 0 : index
    %22 = vector.load %arg12[%c0_23, %c0_24] : memref<8x128xf32, #tpu.memory_space<vmem>>, vector<8x128xf32>
    tpu.vector_store %arg12[%c0_23, %c0_24], %21 {strides = array<i32>} : memref<8x128xf32, #tpu.memory_space<vmem>>, vector<8x128xf32>,
    %23 = tpu.iota {dimensions = array<i32: 1>} : vector<8x128xi32>
    %c32_i32 = arith.constant 32 : i32
    %24 = vector.broadcast %c32_i32 : i32 to vector<8x128xi32>
    %25 = arith.cmpi slt, %23, %24 : vector<8x128xi32>
    %cst_25 = arith.constant -1.000000e+30 : f32
    %26 = vector.broadcast %cst_25 : f32 to vector<8x128xf32>
    %27 = arith.select %25, %21, %26 : vector<8x128xi1>, vector<8x128xf32>
    %cst_26 = arith.constant dense<0xFF800000> : vector<8xf32>
    %28 = vector.multi_reduction <maximumf>, %27, %cst_26 [1] : vector<8x128xf32> to vector<8xf32>
    %29 = vector.shape_cast %28 : vector<8xf32> to vector<8x1xf32>
    %30 = vector.broadcast %29 : vector<8x1xf32> to vector<8x128xf32>
    %31 = arith.subf %27, %30 : vector<8x128xf32>
    %32 = math.exp %31 : vector<8x128xf32>
    %cst_27 = arith.constant dense<0.000000e+00> : vector<8xf32>
    %33 = vector.multi_reduction <add>, %32, %cst_27 [1] : vector<8x128xf32> to vector<8xf32>
    %34 = vector.shape_cast %33 : vector<8xf32> to vector<8x1xf32>
    %35 = tpu.reciprocal %34 {approx = true} : vector<8x1xf32> -> vector<8x1xf32>
    %36 = vector.broadcast %35 : vector<8x1xf32> to vector<8x128xf32>
    %37 = arith.mulf %32, %36 : vector<8x128xf32>
    %cst_28 = arith.constant 1.000000e-07 : f32
    %38 = vector.broadcast %cst_28 : f32 to vector<8x128xf32>
    %39 = arith.addf %37, %38 : vector<8x128xf32>
    %c0_29 = arith.constant 0 : index
    %c0_30 = arith.constant 0 : index
    %40 = vector.load %arg10[%c0_29, %c0_30] : memref<8x128xf32, #tpu.memory_space<vmem>>, vector<8x128xf32>
    tpu.vector_store %arg10[%c0_29, %c0_30], %39 {strides = array<i32>} : memref<8x128xf32, #tpu.memory_space<vmem>>, vector<8x128xf32>,
    return
  }
  func.func @transform_0(%arg0: i32) -> (i32, i32) {
    %c0_i32 = arith.constant 0 : i32
    %c0_i32_0 = arith.constant 0 : i32
    return %arg0, %c0_i32 : i32, i32
  }
  func.func @transform_1(%arg0: i32) -> (i32, i32) {
    %c0_i32 = arith.constant 0 : i32
    %c0_i32_0 = arith.constant 0 : i32
    return %arg0, %c0_i32 : i32, i32
  }
  func.func @transform_2(%arg0: i32) -> (i32, i32) {
    %c0_i32 = arith.constant 0 : i32
    %c0_i32_0 = arith.constant 0 : i32
    return %arg0, %c0_i32 : i32, i32
  }
  func.func @transform_3(%arg0: i32) -> (i32, i32) {
    %c0_i32 = arith.constant 0 : i32
    %c0_i32_0 = arith.constant 0 : i32
    %c0_i32_1 = arith.constant 0 : i32
    return %c0_i32, %c0_i32_0 : i32, i32
  }
  func.func @transform_4(%arg0: i32) -> (i32, i32) {
    %c0_i32 = arith.constant 0 : i32
    %c0_i32_0 = arith.constant 0 : i32
    %c0_i32_1 = arith.constant 0 : i32
    return %c0_i32, %c0_i32_0 : i32, i32
  }
  func.func @transform_5(%arg0: i32) -> (i32, i32) {
    %c0_i32 = arith.constant 0 : i32
    %c0_i32_0 = arith.constant 0 : i32
    %c0_i32_1 = arith.constant 0 : i32
    return %c0_i32, %c0_i32_0 : i32, i32
  }
  func.func @transform_6(%arg0: i32) -> (i32, i32) {
    %c0_i32 = arith.constant 0 : i32
    %c0_i32_0 = arith.constant 0 : i32
    %c0_i32_1 = arith.constant 0 : i32
    return %c0_i32, %c0_i32_0 : i32, i32
  }
  func.func @transform_7(%arg0: i32) -> (i32, i32) {
    %c0_i32 = arith.constant 0 : i32
    %c0_i32_0 = arith.constant 0 : i32
    %c0_i32_1 = arith.constant 0 : i32
    return %c0_i32, %c0_i32_0 : i32, i32
  }
  func.func @transform_8(%arg0: i32) -> (i32, i32) {
    %c0_i32 = arith.constant 0 : i32
    %c0_i32_0 = arith.constant 0 : i32
    %c0_i32_1 = arith.constant 0 : i32
    return %c0_i32, %c0_i32_0 : i32, i32
  }
  func.func @transform_9(%arg0: i32) -> (i32, i32) {
    %c0_i32 = arith.constant 0 : i32
    %c0_i32_0 = arith.constant 0 : i32
    return %arg0, %c0_i32 : i32, i32
  }
  func.func @transform_10(%arg0: i32) -> (i32, i32) {
    %c0_i32 = arith.constant 0 : i32
    %c0_i32_0 = arith.constant 0 : i32
    return %arg0, %c0_i32 : i32, i32
  }
  func.func @transform_11(%arg0: i32) -> (i32, i32) {
    %c0_i32 = arith.constant 0 : i32
    %c0_i32_0 = arith.constant 0 : i32
    return %arg0, %c0_i32 : i32, i32
  }
}

</mosaic_0001>

<llo_original>
// kernel: _forward_impl.1
$region0: #{_forward_impl.1}
  #allocation0 [shape = 'u32[]', space=smem, size = 0x4, offset = 0x4, fixed_abs, tag = 'smem constant byte address 0x4 - core index']
  #allocation1 [shape = 'u32[144,128]{1,0:T(1,128)}', space=vmem, size = 0x12000, scoped, tag = 'internal scratch']
  %s0 = inlined_call_operand.vmem [shape: f32[8,128], index: 0, kind: input, shape index: {}]
  %s1 = inlined_call_operand.vmem [shape: f32[8,128], index: 1, kind: input, shape index: {}]
  %s2 = inlined_call_operand.vmem [shape: f32[8,128], index: 2, kind: input, shape index: {}]
  %s3 = inlined_call_operand.hbm [shape: f32[128,128], index: 3, kind: input, shape index: {}]
  %s4 = inlined_call_operand.hbm [shape: f32[128,128], index: 4, kind: input, shape index: {}]
  %s5 = inlined_call_operand.vmem [shape: f32[1,128], index: 5, kind: input, shape index: {}]
  %s6 = inlined_call_operand.hbm [shape: f32[128,128], index: 6, kind: input, shape index: {}]
  %s7 = inlined_call_operand.hbm [shape: f32[128,128], index: 7, kind: input, shape index: {}]
  %s8 = inlined_call_operand.vmem [shape: f32[1,128], index: 8, kind: input, shape index: {}]
  %s9 = inlined_call_operand.vmem [shape: f32[8,128], index: 9, kind: output, shape index: {0}]
  %s10 = inlined_call_operand.vmem [shape: f32[8,128], index: 10, kind: output, shape index: {1}]
  %s11 = inlined_call_operand.vmem [shape: f32[8,128], index: 11, kind: output, shape index: {2}]
  %12 = xla_tuple %s9, %s10, %s11
  %s13 = sld [smem:[#allocation0]]
  $region78: #{_forward_impl.1} parent=0
    _
  %s15 = ssub.s32 1, %s13
  %s16 = scalar_select 0, %s15, %s13
  $region1: #{_forward_impl.1} parent=0
    #allocation2 [shape = 'u8[65536]{0}', space=vmem, size = 0x10000, scoped, tag = 'input window, operand 3, single buffered']
    #allocation3 [shape = 's32[1]{0}', space=sflag, size = 0x4, scoped, tag = 'scoped memory for _forward_impl.1']
    #allocation4 [shape = 'u8[65536]{0}', space=vmem, size = 0x10000, scoped, tag = 'input window, operand 4, single buffered']
    #allocation5 [shape = 's32[1]{0}', space=sflag, size = 0x4, scoped, tag = 'scoped memory for _forward_impl.1']
    #allocation6 [shape = 'u8[65536]{0}', space=vmem, size = 0x10000, scoped, tag = 'input window, operand 6, single buffered']
    #allocation7 [shape = 'u8[65536]{0}', space=vmem, size = 0x10000, scoped, tag = 'input window, operand 7, single buffered']
    #allocation8 [shape = 's32[1]{0}', space=sflag, size = 0x4, scoped, tag = 'scoped memory for _forward_impl.1']
    %17 = vsyncpa [#allocation3], 0
    %18 = vsyncpa [#allocation5], 0
    %19 = vsyncpa [#allocation8], 0
    // Predicated region
    $region2: #{_forward_impl.1} parent=1 // pred_check
      _
    $region3: #{_forward_impl.1} parent=1 // pred_check_branch
      %21 = sbr.rel (0) target = $region5
    $region4: #{_forward_impl.1} parent=1 // pred_region
      _
    $region5: #{_forward_impl.1} parent=1 // pred_fallthru
      _
    // Predicated region
    $region6: #{_forward_impl.1} parent=1 // pred_check
      _
    $region7: #{_forward_impl.1} parent=1 // pred_check_branch
      %23 = sbr.rel (0) target = $region9
    $region8: #{_forward_impl.1} parent=1 // pred_region
      _
    $region9: #{_forward_impl.1} parent=1 // pred_fallthru
      _
    // Predicated region
    $region10: #{_forward_impl.1} parent=1 // pred_check
      _
    $region11: #{_forward_impl.1} parent=1 // pred_check_branch
      %25 = sbr.rel (0) target = $region13
    $region12: #{_forward_impl.1} parent=1 // pred_region
      _
    $region13: #{_forward_impl.1} parent=1 // pred_fallthru
      _
    // Predicated region
    $region14: #{_forward_impl.1} parent=1 // pred_check
      _
    $region15: #{_forward_impl.1} parent=1 // pred_check_branch
      %27 = sbr.rel (0) target = $region17
    $region16: #{_forward_impl.1} parent=1 // pred_region
      %s29 = ssub.s32 2048, 2048
      %30 = vsyncadd [#allocation3], %s29
      %s31 = sshll.u32 [#allocation2], 4
      %s32 = int_to_ptr.vmem [resolvable:$true] %s31
      %37 = dma.hbm_to_vmem [thread:$0]  %s3, 2048, %s32, [#allocation3], 128, 128, 8
    $region17: #{_forward_impl.1} parent=1 // pred_fallthru
      _
    // Predicated region
    $region18: #{_forward_impl.1} parent=1 // pred_check
      _
    $region19: #{_forward_impl.1} parent=1 // pred_check_branch
      %39 = sbr.rel (0) target = $region21
    $region20: #{_forward_impl.1} parent=1 // pred_region
      %s41 = ssub.s32 2048, 2048
      %42 = vsyncadd [#allocation5], %s41
      %s43 = sshll.u32 [#allocation4], 4
      %s44 = int_to_ptr.vmem [resolvable:$true] %s43
      %49 = dma.hbm_to_vmem [thread:$0]  %s4, 2048, %s44, [#allocation5], 128, 128, 8
    $region21: #{_forward_impl.1} parent=1 // pred_fallthru
      _
    // Predicated region
    $region22: #{_forward_impl.1} parent=1 // pred_check
      _
    $region23: #{_forward_impl.1} parent=1 // pred_check_branch
      %51 = sbr.rel (0) target = $region25
    $region24: #{_forward_impl.1} parent=1 // pred_region
      _
    $region25: #{_forward_impl.1} parent=1 // pred_fallthru
      _
    // Predicated region
    $region26: #{_forward_impl.1} parent=1 // pred_check
      _
    $region27: #{_forward_impl.1} parent=1 // pred_check_branch
      %53 = sbr.rel (0) target = $region29
    $region28: #{_forward_impl.1} parent=1 // pred_region
      %s55 = ssub.s32 2048, 2048
      %56 = vsyncadd [#allocation5], %s55
      %s57 = sshll.u32 [#allocation6], 4
      %s58 = int_to_ptr.vmem [resolvable:$true] %s57
      %63 = dma.hbm_to_vmem [thread:$0]  %s6, 2048, %s58, [#allocation5], 128, 128, 8
    $region29: #{_forward_impl.1} parent=1 // pred_fallthru
      _
    // Predicated region
    $region30: #{_forward_impl.1} parent=1 // pred_check
      _
    $region31: #{_forward_impl.1} parent=1 // pred_check_branch
      %65 = sbr.rel (0) target = $region33
    $region32: #{_forward_impl.1} parent=1 // pred_region
      %s67 = ssub.s32 2048, 2048
      %68 = vsyncadd [#allocation8], %s67
      %s69 = sshll.u32 [#allocation7], 4
      %s70 = int_to_ptr.vmem [resolvable:$true] %s69
      %75 = dma.hbm_to_vmem [thread:$0]  %s7, 2048, %s70, [#allocation8], 128, 128, 8
    $region33: #{_forward_impl.1} parent=1 // pred_fallthru
      _
    // Predicated region
    $region34: #{_forward_impl.1} parent=1 // pred_check
      _
    $region35: #{_forward_impl.1} parent=1 // pred_check_branch
      %77 = sbr.rel (0) target = $region37
    $region36: #{_forward_impl.1} parent=1 // pred_region
      _
    $region37: #{_forward_impl.1} parent=1 // pred_fallthru
      _
    // Predicated region
    $region38: #{_forward_impl.1} parent=1 // pred_check
      _
    $region39: #{_forward_impl.1} parent=1 // pred_check_branch
      %79 = sbr.rel (0) target = $region41
    $region40: #{_forward_impl.1} parent=1 // pred_region
      %80 = dma.done [#allocation3], 2048
    $region41: #{_forward_impl.1} parent=1 // pred_fallthru
      _
    // Predicated region
    $region42: #{_forward_impl.1} parent=1 // pred_check
      _
    $region43: #{_forward_impl.1} parent=1 // pred_check_branch
      %82 = sbr.rel (0) target = $region45
    $region44: #{_forward_impl.1} parent=1 // pred_region
      %83 = dma.done [#allocation5], 2048
    $region45: #{_forward_impl.1} parent=1 // pred_fallthru
      _
    // Predicated region
    $region46: #{_forward_impl.1} parent=1 // pred_check
      _
    $region47: #{_forward_impl.1} parent=1 // pred_check_branch
      %85 = sbr.rel (0) target = $region49
    $region48: #{_forward_impl.1} parent=1 // pred_region
      %86 = dma.done [#allocation5], 2048
    $region49: #{_forward_impl.1} parent=1 // pred_fallthru
      _
    // Predicated region
    $region50: #{_forward_impl.1} parent=1 // pred_check
      _
    $region51: #{_forward_impl.1} parent=1 // pred_check_branch
      %88 = sbr.rel (0) target = $region53
    $region52: #{_forward_impl.1} parent=1 // pred_region
      %89 = dma.done [#allocation8], 2048
    $region53: #{_forward_impl.1} parent=1 // pred_fallthru
      _
    %v90 = vld [vmem:[%s0] sm:$0xff]
    %v91 = vld [vmem:[#allocation2] sm:$0xff]
    %v92 = vld [vmem:[#allocation2 + $0x8] sm:$0xff]
    %v93 = vld [vmem:[#allocation2 + $0x10] sm:$0xff]
    %v94 = vld [vmem:[#allocation2 + $0x18] sm:$0xff]
    %v95 = vld [vmem:[#allocation2 + $0x20] sm:$0xff]
    %v96 = vld [vmem:[#allocation2 + $0x28] sm:$0xff]
    %v97 = vld [vmem:[#allocation2 + $0x30] sm:$0xff]
    %v98 = vld [vmem:[#allocation2 + $0x38] sm:$0xff]
    %v99 = vld [vmem:[#allocation2 + $0x40] sm:$0xff]
    %v100 = vld [vmem:[#allocation2 + $0x48] sm:$0xff]
    %v101 = vld [vmem:[#allocation2 + $0x50] sm:$0xff]
    %v102 = vld [vmem:[#allocation2 + $0x58] sm:$0xff]
    %v103 = vld [vmem:[#allocation2 + $0x60] sm:$0xff]
    %v104 = vld [vmem:[#allocation2 + $0x68] sm:$0xff]
    %v105 = vld [vmem:[#allocation2 + $0x70] sm:$0xff]
    %v106 = vld [vmem:[#allocation2 + $0x78] sm:$0xff]
    %v107 = vld [vmem:[%s1] sm:$0xff]
    %v108 = vld [vmem:[#allocation4] sm:$0xff]
    %v109 = vld [vmem:[#allocation4 + $0x8] sm:$0xff]
    %v110 = vld [vmem:[#allocation4 + $0x10] sm:$0xff]
    %v111 = vld [vmem:[#allocation4 + $0x18] sm:$0xff]
    %v112 = vld [vmem:[#allocation4 + $0x20] sm:$0xff]
    %v113 = vld [vmem:[#allocation4 + $0x28] sm:$0xff]
    %v114 = vld [vmem:[#allocation4 + $0x30] sm:$0xff]
    %v115 = vld [vmem:[#allocation4 + $0x38] sm:$0xff]
    %v116 = vld [vmem:[#allocation4 + $0x40] sm:$0xff]
    %v117 = vld [vmem:[#allocation4 + $0x48] sm:$0xff]
    %v118 = vld [vmem:[#allocation4 + $0x50] sm:$0xff]
    %v119 = vld [vmem:[#allocation4 + $0x58] sm:$0xff]
    %v120 = vld [vmem:[#allocation4 + $0x60] sm:$0xff]
    %v121 = vld [vmem:[#allocation4 + $0x68] sm:$0xff]
    %v122 = vld [vmem:[#allocation4 + $0x70] sm:$0xff]
    %v123 = vld [vmem:[#allocation4 + $0x78] sm:$0xff]
    %124 = vmatprep.subr.mxu0 0.0
    %125 = vmatpush1.msra.mxu0 %v123
    %126 = vmatprep.subr.mxu0 0.0
    %127 = vmatpush1.msra.mxu0 %v122
    %128 = vmatprep.subr.mxu0 0.0
    %129 = vmatpush1.msra.mxu0 %v121
    %130 = vmatprep.subr.mxu0 0.0
    %131 = vmatpush1.msra.mxu0 %v120
    %132 = vmatprep.subr.mxu0 0.0
    %133 = vmatpush1.msra.mxu0 %v119
    %134 = vmatprep.subr.mxu0 0.0
    %135 = vmatpush1.msra.mxu0 %v118
    %136 = vmatprep.subr.mxu0 0.0
    %137 = vmatpush1.msra.mxu0 %v117
    %138 = vmatprep.subr.mxu0 0.0
    %139 = vmatpush1.msra.mxu0 %v116
    %140 = vmatprep.subr.mxu0 0.0
    %141 = vmatpush1.msra.mxu0 %v115
    %142 = vmatprep.subr.mxu0 0.0
    %143 = vmatpush1.msra.mxu0 %v114
    %144 = vmatprep.subr.mxu0 0.0
    %145 = vmatpush1.msra.mxu0 %v113
    %146 = vmatprep.subr.mxu0 0.0
    %147 = vmatpush1.msra.mxu0 %v112
    %148 = vmatprep.subr.mxu0 0.0
    %149 = vmatpush1.msra.mxu0 %v111
    %150 = vmatprep.subr.mxu0 0.0
    %151 = vmatpush1.msra.mxu0 %v110
    %152 = vmatprep.subr.mxu0 0.0
    %153 = vmatpush1.msra.mxu0 %v109
    %154 = vmatprep.subr.mxu0 0.0
    %155 = vmatpush1.msra.mxu0 %v108
    %156 = vmatprep.subr.mxu0 0.0
    %157 = vmatpush2.msra.mxu0 0.0
    %158 = vmatprep.subr.mxu0 0.0
    %159 = vmatpush2.msra.mxu0 0.0
    %160 = vmatprep.subr.mxu0 0.0
    %161 = vmatpush2.msra.mxu0 0.0
    %162 = vmatprep.subr.mxu0 0.0
    %163 = vmatpush2.msra.mxu0 0.0
    %164 = vmatprep.subr.mxu0 0.0
    %165 = vmatpush2.msra.mxu0 0.0
    %166 = vmatprep.subr.mxu0 0.0
    %167 = vmatpush2.msra.mxu0 0.0
    %168 = vmatprep.subr.mxu0 0.0
    %169 = vmatpush2.msra.mxu0 0.0
    %170 = vmatprep.subr.mxu0 0.0
    %171 = vmatpush2.msra.mxu0 0.0
    %172 = vmatprep.subr.mxu0 0.0
    %173 = vmatpush2.msra.mxu0 0.0
    %174 = vmatprep.subr.mxu0 0.0
    %175 = vmatpush2.msra.mxu0 0.0
    %176 = vmatprep.subr.mxu0 0.0
    %177 = vmatpush2.msra.mxu0 0.0
    %178 = vmatprep.subr.mxu0 0.0
    %179 = vmatpush2.msra.mxu0 0.0
    %180 = vmatprep.subr.mxu0 0.0
    %181 = vmatpush2.msra.mxu0 0.0
    %182 = vmatprep.subr.mxu0 0.0
    %183 = vmatpush2.msra.mxu0 0.0
    %184 = vmatprep.subr.mxu0 0.0
    %185 = vmatpush2.msra.mxu0 0.0
    %186 = vmatprep.subr.mxu0 0.0
    %187 = vmatpush2.msra.mxu0 0.0
    %188 = vmatprep.mubr.f32.mxu0 0.0
    %189 = vmatmul.mubr.f32.gmra.mxu0 %v107
    %v190 = vpop.f32.mrf.mxu0
    %v191 = vadd.f32 0.0, %v190
    %v192 = vpop.f32.mrf.mxu0
    %193 = vdwg.mxu0
    %194 = vmatprep.subr.mxu0 0.0
    %195 = vmatpush1.msra.mxu0 %v106
    %196 = vmatprep.subr.mxu0 0.0
    %197 = vmatpush1.msra.mxu0 %v105
    %198 = vmatprep.subr.mxu0 0.0
    %199 = vmatpush1.msra.mxu0 %v104
    %200 = vmatprep.subr.mxu0 0.0
    %201 = vmatpush1.msra.mxu0 %v103
    %202 = vmatprep.subr.mxu0 0.0
    %203 = vmatpush1.msra.mxu0 %v102
    %204 = vmatprep.subr.mxu0 0.0
    %205 = vmatpush1.msra.mxu0 %v101
    %206 = vmatprep.subr.mxu0 0.0
    %207 = vmatpush1.msra.mxu0 %v100
    %208 = vmatprep.subr.mxu0 0.0
    %209 = vmatpush1.msra.mxu0 %v99
    %210 = vmatprep.subr.mxu0 0.0
    %211 = vmatpush1.msra.mxu0 %v98
    %212 = vmatprep.subr.mxu0 0.0
    %213 = vmatpush1.msra.mxu0 %v97
    %214 = vmatprep.subr.mxu0 0.0
    %215 = vmatpush1.msra.mxu0 %v96
    %216 = vmatprep.subr.mxu0 0.0
    %217 = vmatpush1.msra.mxu0 %v95
    %218 = vmatprep.subr.mxu0 0.0
    %219 = vmatpush1.msra.mxu0 %v94
    %220 = vmatprep.subr.mxu0 0.0
    %221 = vmatpush1.msra.mxu0 %v93
    %222 = vmatprep.subr.mxu0 0.0
    %223 = vmatpush1.msra.mxu0 %v92
    %224 = vmatprep.subr.mxu0 0.0
    %225 = vmatpush1.msra.mxu0 %v91
    %226 = vmatprep.subr.mxu0 0.0
    %227 = vmatpush2.msra.mxu0 0.0
    %228 = vmatprep.subr.mxu0 0.0
    %229 = vmatpush2.msra.mxu0 0.0
    %230 = vmatprep.subr.mxu0 0.0
    %231 = vmatpush2.msra.mxu0 0.0
    %232 = vmatprep.subr.mxu0 0.0
    %233 = vmatpush2.msra.mxu0 0.0
    %234 = vmatprep.subr.mxu0 0.0
    %235 = vmatpush2.msra.mxu0 0.0
    %236 = vmatprep.subr.mxu0 0.0
    %237 = vmatpush2.msra.mxu0 0.0
    %238 = vmatprep.subr.mxu0 0.0
    %239 = vmatpush2.msra.mxu0 0.0
    %240 = vmatprep.subr.mxu0 0.0
    %241 = vmatpush2.msra.mxu0 0.0
    %242 = vmatprep.subr.mxu0 0.0
    %243 = vmatpush2.msra.mxu0 0.0
    %244 = vmatprep.subr.mxu0 0.0
    %245 = vmatpush2.msra.mxu0 0.0
    %246 = vmatprep.subr.mxu0 0.0
    %247 = vmatpush2.msra.mxu0 0.0
    %248 = vmatprep.subr.mxu0 0.0
    %249 = vmatpush2.msra.mxu0 0.0
    %250 = vmatprep.subr.mxu0 0.0
    %251 = vmatpush2.msra.mxu0 0.0
    %252 = vmatprep.subr.mxu0 0.0
    %253 = vmatpush2.msra.mxu0 0.0
    %254 = vmatprep.subr.mxu0 0.0
    %255 = vmatpush2.msra.mxu0 0.0
    %256 = vmatprep.subr.mxu0 0.0
    %257 = vmatpush2.msra.mxu0 0.0
    %258 = vmatprep.mubr.f32.mxu0 0.0
    %259 = vmatmul.mubr.f32.gmra.mxu0 %v90
    %v260 = vpop.f32.mrf.mxu0
    %v261 = vadd.f32 %v191, %v260
    %v262 = vpop.f32.mrf.mxu0
    %263 = vdwg.mxu0
    %v264 = vld [vmem:[%s5] sm:$0x1]
    %v266 = vlaneseq
    %v267 = vshrl.u32 %v266, 7
    %v268 = vsub.s32 0, %v267
    %v269 = vrot.slane %v264, %v268
    %v271 = vadd.f32 %v261, %v269
    %v272 = vmax.f32 %v271, 0.0
    %273 = vst [vmem:[%s10] sm:$0xff] %v272
    %v274 = vld [vmem:[#allocation6] sm:$0xff]
    %v275 = vld [vmem:[#allocation6 + $0x8] sm:$0xff]
    %v276 = vld [vmem:[#allocation6 + $0x10] sm:$0xff]
    %v277 = vld [vmem:[#allocation6 + $0x18] sm:$0xff]
    %v278 = vld [vmem:[#allocation6 + $0x20] sm:$0xff]
    %v279 = vld [vmem:[#allocation6 + $0x28] sm:$0xff]
    %v280 = vld [vmem:[#allocation6 + $0x30] sm:$0xff]
    %v281 = vld [vmem:[#allocation6 + $0x38] sm:$0xff]
    %v282 = vld [vmem:[#allocation6 + $0x40] sm:$0xff]
    %v283 = vld [vmem:[#allocation6 + $0x48] sm:$0xff]
    %v284 = vld [vmem:[#allocation6 + $0x50] sm:$0xff]
    %v285 = vld [vmem:[#allocation6 + $0x58] sm:$0xff]
    %v286 = vld [vmem:[#allocation6 + $0x60] sm:$0xff]
    %v287 = vld [vmem:[#allocation6 + $0x68] sm:$0xff]
    %v288 = vld [vmem:[#allocation6 + $0x70] sm:$0xff]
    %v289 = vld [vmem:[#allocation6 + $0x78] sm:$0xff]
    %v290 = vld [vmem:[%s2] sm:$0xff]
    %v291 = vld [vmem:[#allocation7] sm:$0xff]
    %v292 = vld [vmem:[#allocation7 + $0x8] sm:$0xff]
    %v293 = vld [vmem:[#allocation7 + $0x10] sm:$0xff]
    %v294 = vld [vmem:[#allocation7 + $0x18] sm:$0xff]
    %v295 = vld [vmem:[#allocation7 + $0x20] sm:$0xff]
    %v296 = vld [vmem:[#allocation7 + $0x28] sm:$0xff]
    %v297 = vld [vmem:[#allocation7 + $0x30] sm:$0xff]
    %v298 = vld [vmem:[#allocation7 + $0x38] sm:$0xff]
    %v299 = vld [vmem:[#allocation7 + $0x40] sm:$0xff]
    %v300 = vld [vmem:[#allocation7 + $0x48] sm:$0xff]
    %v301 = vld [vmem:[#allocation7 + $0x50] sm:$0xff]
    %v302 = vld [vmem:[#allocation7 + $0x58] sm:$0xff]
    %v303 = vld [vmem:[#allocation7 + $0x60] sm:$0xff]
    %v304 = vld [vmem:[#allocation7 + $0x68] sm:$0xff]
    %v305 = vld [vmem:[#allocation7 + $0x70] sm:$0xff]
    %v306 = vld [vmem:[#allocation7 + $0x78] sm:$0xff]
    %307 = vmatprep.subr.mxu0 0.0
    %308 = vmatpush1.msra.mxu0 %v306
    %309 = vmatprep.subr.mxu0 0.0
    %310 = vmatpush1.msra.mxu0 %v305
    %311 = vmatprep.subr.mxu0 0.0
    %312 = vmatpush1.msra.mxu0 %v304
    %313 = vmatprep.subr.mxu0 0.0
    %314 = vmatpush1.msra.mxu0 %v303
    %315 = vmatprep.subr.mxu0 0.0
    %316 = vmatpush1.msra.mxu0 %v302
    %317 = vmatprep.subr.mxu0 0.0
    %318 = vmatpush1.msra.mxu0 %v301
    %319 = vmatprep.subr.mxu0 0.0
    %320 = vmatpush1.msra.mxu0 %v300
    %321 = vmatprep.subr.mxu0 0.0
    %322 = vmatpush1.msra.mxu0 %v299
    %323 = vmatprep.subr.mxu0 0.0
    %324 = vmatpush1.msra.mxu0 %v298
    %325 = vmatprep.subr.mxu0 0.0
    %326 = vmatpush1.msra.mxu0 %v297
    %327 = vmatprep.subr.mxu0 0.0
    %328 = vmatpush1.msra.mxu0 %v296
    %329 = vmatprep.subr.mxu0 0.0
    %330 = vmatpush1.msra.mxu0 %v295
    %331 = vmatprep.subr.mxu0 0.0
    %332 = vmatpush1.msra.mxu0 %v294
    %333 = vmatprep.subr.mxu0 0.0
    %334 = vmatpush1.msra.mxu0 %v293
    %335 = vmatprep.subr.mxu0 0.0
    %336 = vmatpush1.msra.mxu0 %v292
    %337 = vmatprep.subr.mxu0 0.0
    %338 = vmatpush1.msra.mxu0 %v291
    %339 = vmatprep.subr.mxu0 0.0
    %340 = vmatpush2.msra.mxu0 0.0
    %341 = vmatprep.subr.mxu0 0.0
    %342 = vmatpush2.msra.mxu0 0.0
    %343 = vmatprep.subr.mxu0 0.0
    %344 = vmatpush2.msra.mxu0 0.0
    %345 = vmatprep.subr.mxu0 0.0
    %346 = vmatpush2.msra.mxu0 0.0
    %347 = vmatprep.subr.mxu0 0.0
    %348 = vmatpush2.msra.mxu0 0.0
    %349 = vmatprep.subr.mxu0 0.0
    %350 = vmatpush2.msra.mxu0 0.0
    %351 = vmatprep.subr.mxu0 0.0
    %352 = vmatpush2.msra.mxu0 0.0
    %353 = vmatprep.subr.mxu0 0.0
    %354 = vmatpush2.msra.mxu0 0.0
    %355 = vmatprep.subr.mxu0 0.0
    %356 = vmatpush2.msra.mxu0 0.0
    %357 = vmatprep.subr.mxu0 0.0
    %358 = vmatpush2.msra.mxu0 0.0
    %359 = vmatprep.subr.mxu0 0.0
    %360 = vmatpush2.msra.mxu0 0.0
    %361 = vmatprep.subr.mxu0 0.0
    %362 = vmatpush2.msra.mxu0 0.0
    %363 = vmatprep.subr.mxu0 0.0
    %364 = vmatpush2.msra.mxu0 0.0
    %365 = vmatprep.subr.mxu0 0.0
    %366 = vmatpush2.msra.mxu0 0.0
    %367 = vmatprep.subr.mxu0 0.0
    %368 = vmatpush2.msra.mxu0 0.0
    %369 = vmatprep.subr.mxu0 0.0
    %370 = vmatpush2.msra.mxu0 0.0
    %371 = vmatprep.mubr.f32.mxu0 0.0
    %372 = vmatmul.mubr.f32.gmra.mxu0 %v290
    %v373 = vpop.f32.mrf.mxu0
    %v374 = vadd.f32 0.0, %v373
    %v375 = vpop.f32.mrf.mxu0
    %376 = vdwg.mxu0
    %377 = vmatprep.subr.mxu0 0.0
    %378 = vmatpush1.msra.mxu0 %v289
    %379 = vmatprep.subr.mxu0 0.0
    %380 = vmatpush1.msra.mxu0 %v288
    %381 = vmatprep.subr.mxu0 0.0
    %382 = vmatpush1.msra.mxu0 %v287
    %383 = vmatprep.subr.mxu0 0.0
    %384 = vmatpush1.msra.mxu0 %v286
    %385 = vmatprep.subr.mxu0 0.0
    %386 = vmatpush1.msra.mxu0 %v285
    %387 = vmatprep.subr.mxu0 0.0
    %388 = vmatpush1.msra.mxu0 %v284
    %389 = vmatprep.subr.mxu0 0.0
    %390 = vmatpush1.msra.mxu0 %v283
    %391 = vmatprep.subr.mxu0 0.0
    %392 = vmatpush1.msra.mxu0 %v282
    %393 = vmatprep.subr.mxu0 0.0
    %394 = vmatpush1.msra.mxu0 %v281
    %395 = vmatprep.subr.mxu0 0.0
    %396 = vmatpush1.msra.mxu0 %v280
    %397 = vmatprep.subr.mxu0 0.0
    %398 = vmatpush1.msra.mxu0 %v279
    %399 = vmatprep.subr.mxu0 0.0
    %400 = vmatpush1.msra.mxu0 %v278
    %401 = vmatprep.subr.mxu0 0.0
    %402 = vmatpush1.msra.mxu0 %v277
    %403 = vmatprep.subr.mxu0 0.0
    %404 = vmatpush1.msra.mxu0 %v276
    %405 = vmatprep.subr.mxu0 0.0
    %406 = vmatpush1.msra.mxu0 %v275
    %407 = vmatprep.subr.mxu0 0.0
    %408 = vmatpush1.msra.mxu0 %v274
    %409 = vmatprep.subr.mxu0 0.0
    %410 = vmatpush2.msra.mxu0 0.0
    %411 = vmatprep.subr.mxu0 0.0
    %412 = vmatpush2.msra.mxu0 0.0
    %413 = vmatprep.subr.mxu0 0.0
    %414 = vmatpush2.msra.mxu0 0.0
    %415 = vmatprep.subr.mxu0 0.0
    %416 = vmatpush2.msra.mxu0 0.0
    %417 = vmatprep.subr.mxu0 0.0
    %418 = vmatpush2.msra.mxu0 0.0
    %419 = vmatprep.subr.mxu0 0.0
    %420 = vmatpush2.msra.mxu0 0.0
    %421 = vmatprep.subr.mxu0 0.0
    %422 = vmatpush2.msra.mxu0 0.0
    %423 = vmatprep.subr.mxu0 0.0
    %424 = vmatpush2.msra.mxu0 0.0
    %425 = vmatprep.subr.mxu0 0.0
    %426 = vmatpush2.msra.mxu0 0.0
    %427 = vmatprep.subr.mxu0 0.0
    %428 = vmatpush2.msra.mxu0 0.0
    %429 = vmatprep.subr.mxu0 0.0
    %430 = vmatpush2.msra.mxu0 0.0
    %431 = vmatprep.subr.mxu0 0.0
    %432 = vmatpush2.msra.mxu0 0.0
    %433 = vmatprep.subr.mxu0 0.0
    %434 = vmatpush2.msra.mxu0 0.0
    %435 = vmatprep.subr.mxu0 0.0
    %436 = vmatpush2.msra.mxu0 0.0
    %437 = vmatprep.subr.mxu0 0.0
    %438 = vmatpush2.msra.mxu0 0.0
    %439 = vmatprep.subr.mxu0 0.0
    %440 = vmatpush2.msra.mxu0 0.0
    %441 = vmatprep.mubr.f32.mxu0 0.0
    %442 = vmatmul.mubr.f32.gmra.mxu0 %v272
    %v443 = vpop.f32.mrf.mxu0
    %v444 = vadd.f32 %v374, %v443
    %v445 = vpop.f32.mrf.mxu0
    %446 = vdwg.mxu0
    %v447 = vld [vmem:[%s8] sm:$0x1]
    %v449 = vlaneseq
    %v450 = vshrl.u32 %v449, 7
    %v451 = vsub.s32 0, %v450
    %v452 = vrot.slane %v447, %v451
    %v454 = vadd.f32 %v444, %v452
    %455 = vst [vmem:[%s11] sm:$0xff] %v454
    %v456 = vlaneseq
    %v457 = vand.u32 %v456, 127
    %vm458 = vcmp.lt.s32.totalorder %v457, 32
    %v459 = vsel %vm458, %v454, -1e+30
    %460 = vmax.xlane.f32.xlu0 %v459
    %v461 = vpop.xlane.xlu0 %460
    %v462 = vsub.f32 %v459, %v461
    %v463 = vmul.f32 %v462, 1.442695
    %v464 = vpow.pop %v463
    %465 = vadd.xlane.f32.xlu0 %v464
    %v466 = vpop.xlane.xlu0 %465
    %v467 = vrcp.pop %v466
    %v468 = vmul.f32 %v464, %v467
    %v469 = vadd.f32 %v468, 1e-07
    %470 = vst [vmem:[%s9] sm:$0xff] %v469
    // Predicated region
    $region54: #{_forward_impl.1} parent=1 // pred_check
      _
    $region55: #{_forward_impl.1} parent=1 // pred_check_branch
      %472 = sbr.rel (0) target = $region57
    $region56: #{_forward_impl.1} parent=1 // pred_region
      _
    $region57: #{_forward_impl.1} parent=1 // pred_fallthru
      _
    // Predicated region
    $region58: #{_forward_impl.1} parent=1 // pred_check
      _
    $region59: #{_forward_impl.1} parent=1 // pred_check_branch
      %474 = sbr.rel (0) target = $region61
    $region60: #{_forward_impl.1} parent=1 // pred_region
      _
    $region61: #{_forward_impl.1} parent=1 // pred_fallthru
      _
    // Predicated region
    $region62: #{_forward_impl.1} parent=1 // pred_check
      _
    $region63: #{_forward_impl.1} parent=1 // pred_check_branch
      %476 = sbr.rel (0) target = $region65
    $region64: #{_forward_impl.1} parent=1 // pred_region
      _
    $region65: #{_forward_impl.1} parent=1 // pred_fallthru
      _
    // Predicated region
    $region66: #{_forward_impl.1} parent=1 // pred_check
      _
    $region67: #{_forward_impl.1} parent=1 // pred_check_branch
      %478 = sbr.rel (0) target = $region69
    $region68: #{_forward_impl.1} parent=1 // pred_region
      _
    $region69: #{_forward_impl.1} parent=1 // pred_fallthru
      _
    // Predicated region
    $region70: #{_forward_impl.1} parent=1 // pred_check
      _
    $region71: #{_forward_impl.1} parent=1 // pred_check_branch
      %480 = sbr.rel (0) target = $region73
    $region72: #{_forward_impl.1} parent=1 // pred_region
      _
    $region73: #{_forward_impl.1} parent=1 // pred_fallthru
      _
    // Predicated region
    $region74: #{_forward_impl.1} parent=1 // pred_check
      _
    $region75: #{_forward_impl.1} parent=1 // pred_check_branch
      %482 = sbr.rel (0) target = $region77
    $region76: #{_forward_impl.1} parent=1 // pred_region
      _
    $region77: #{_forward_impl.1} parent=1 // pred_fallthru
      _
    %483 = vsyncpa [#allocation3], 1
    %484 = vsyncpa [#allocation5], 1
    %485 = vsyncpa [#allocation8], 1

</llo_original>
